<compile_context>
chip_gen: v7x
topology: tpu7x:2x2x1
jax: 0.10.0
libtpu: 0.0.40
codegen_flags: <defaults>
</compile_context>

<pallas_src>
import jax
import jax.numpy as jnp
from jax.experimental import pallas as pl
from jax.experimental.pallas import tpu as pltpu


def _normalization_kernel(img_ref, mean_ref, inv_ref, out_ref):
    # img_ref / out_ref : (TM, TL) tiles of the flattened (R, Lp) image.
    # mean_ref / inv_ref: whole (Rpad, 1) per-row params, VMEM-resident for the
    #                     entire kernel; sliced by the row-block index.
    tm = out_ref.shape[0]
    r0 = pl.program_id(0) * tm
    m = mean_ref[pl.ds(r0, tm), :]          # (TM, 1), broadcasts over lanes
    s = inv_ref[pl.ds(r0, tm), :]           # (TM, 1)
    out_ref[...] = ((img_ref[...] - m) * s).astype(out_ref.dtype)


def _vmem_capacity_bytes():
    try:
        return int(pltpu.get_tpu_info().vmem_capacity_bytes)
    except Exception:
        return 64 << 20  # conservative (v7x-sized) fallback


def _pick_tiles(R, Lp, itemsize, target_elems, total_bytes):
    """Pick (TM, TL): TM first (dtype-aware sublane packing), then TL from the
    byte budget (multiple of 128); enforce a minimum grid size for big inputs."""
    sublanes = {4: 8, 2: 16, 1: 32}.get(itemsize, 8)
    TM = R if R <= sublanes else sublanes            # full dim or packing-aligned
    tl_cap = max(128, (target_elems // TM) // 128 * 128)
    TL = min(Lp, tl_cap)
    # For non-trivial inputs make sure there are enough grid steps that the
    # in-DMA / compute / out-DMA pipeline overlaps and (on v7x) both
    # TensorCores get work along the "parallel" axes.
    if total_bytes > (4 << 20):
        while pl.cdiv(R, TM) * pl.cdiv(Lp, TL) < 8 and TL > 512:
            TL = max(512, (TL // 2) // 128 * 128)
    return TM, TL


def normalization(img, mean, std):
    """img: (N, C, H, W); mean/std: (C,). Returns (img - mean[c]) / std[c]."""
    N, C, H, W = img.shape
    R, L = N * C, H * W
    itemsize = jnp.dtype(img.dtype).itemsize

    # Lane-dense 2D view; pad lanes to a multiple of 128 (free when H*W already
    # is one, e.g. the 16x16 test case).
    Lp = ((L + 127) // 128) * 128
    img2 = img.reshape(R, L)
    if Lp != L:
        img2 = jnp.pad(img2, ((0, 0), (0, Lp - L)))

    # Per-buffer budget: <= 2 MiB (already ~85% of HBM roofline) and chip-aware
    # so 2x(in) + 2x(out) double buffers stay under ~25% of physical VMEM.
    vmem_phys = _vmem_capacity_bytes()
    per_buf_bytes = max(256 << 10, min(2 << 20, vmem_phys // 16))
    target_elems = max(8 * 128, per_buf_bytes // itemsize)

    TM, TL = _pick_tiles(R, Lp, itemsize, target_elems, R * Lp * itemsize)
    grid = (pl.cdiv(R, TM), pl.cdiv(Lp, TL))
    Rpad = grid[0] * TM

    # Per-row params (mean, 1/std): 3-element divide done once here so the
    # kernel never issues a vector divide; padded to Rpad so the in-kernel row
    # slice on the last (possibly partial) row block never reads OOB.
    inv_std = 1.0 / std.astype(jnp.float32)
    mean_r = jnp.broadcast_to(mean.astype(jnp.float32)[None, :], (N, C)).reshape(R, 1)
    inv_r = jnp.broadcast_to(inv_std[None, :], (N, C)).reshape(R, 1)
    if Rpad != R:
        mean_r = jnp.pad(mean_r, ((0, Rpad - R), (0, 0)))
        inv_r = jnp.pad(inv_r, ((0, Rpad - R), (0, 0)), constant_values=1.0)

    grid_spec = pltpu.PrefetchScalarGridSpec(
        num_scalar_prefetch=0,
        grid=grid,
        in_specs=[
            pl.BlockSpec((TM, TL), lambda i, j: (i, j)),         # image tile
            pl.BlockSpec(memory_space=pltpu.MemorySpace.VMEM),   # mean, resident
            pl.BlockSpec(memory_space=pltpu.MemorySpace.VMEM),   # 1/std, resident
        ],
        out_specs=pl.BlockSpec((TM, TL), lambda i, j: (i, j)),
    )

    cost = pl.CostEstimate(
        flops=2 * R * L,
        transcendentals=0,
        bytes_accessed=2 * R * Lp * itemsize + 2 * Rpad * 4,
    )

    out2 = pl.pallas_call(
        _normalization_kernel,
        out_shape=jax.ShapeDtypeStruct((R, Lp), img.dtype),
        grid_spec=grid_spec,
        compiler_params=pltpu.CompilerParams(
            # Pure elementwise map: both grid axes independent -> "parallel"
            # (enables 2-TC sharding on v7x at zero cost elsewhere).
            dimension_semantics=("parallel", "parallel"),
            # Explicit scoped-VMEM limit so the kernel does not depend on
            # per-generation defaults (16 MiB v5e / 32 MiB v6e+v7x).
            vmem_limit_bytes=int(min(vmem_phys // 2, 64 << 20)),
        ),
        cost_estimate=cost,
    )(img2, mean_r, inv_r)

    if Lp != L:
        out2 = out2[:, :L]
    return out2.reshape(N, C, H, W)


if __name__ == "__main__":
    # Deterministic parameters from the module's __init__ (ImageNet stats).
    mean = jnp.array([0.485, 0.456, 0.406], dtype=jnp.float32)
    std = jnp.array([0.229, 0.224, 0.225], dtype=jnp.float32)

    # Small NCHW input consistent with the module (RGB => C=3).
    key = jax.random.PRNGKey(0)
    img = jax.random.uniform(key, (2, 3, 16, 16), dtype=jnp.float32)

    out = jax.block_until_ready(normalization(img, mean, std))

    # Reference check (plain JAX, mirrors the PyTorch broadcasting). Tolerance
    # slightly relaxed since the kernel multiplies by a precomputed 1/std
    # (~1 ulp difference vs. a true divide).
    ref = (img - mean[None, :, None, None]) / std[None, :, None, None]
    assert out.shape == img.shape and out.dtype == img.dtype
    assert jnp.allclose(out, ref, atol=1e-5, rtol=1e-5)

    print("KERNEL_OK")
</pallas_src>

<mosaic_0001>
module attributes {stable_mosaic.version = 11 : i64} {
  func.func @_normalization_kernel(%arg0: i32, %arg1: i32, %arg2: memref<6x256xf32, #tpu.memory_space<vmem>>, %arg3: memref<6x1xf32, #tpu.memory_space<vmem>>, %arg4: memref<6x1xf32, #tpu.memory_space<vmem>>, %arg5: memref<6x256xf32, #tpu.memory_space<vmem>>) attributes {dimension_semantics = [#tpu.dimension_semantics<parallel>, #tpu.dimension_semantics<parallel>], iteration_bounds = array<i64: 1, 1>, scalar_prefetch = 0 : i64, scratch_operands = 0 : i64, tpu.core_type = #tpu.core_type<tc>, window_params = [{transform_indices = @transform_0, window_bounds = array<i64: 6, 256>}, {pipeline_mode = #tpu.pipeline_mode<synchronous>, transform_indices = @transform_1, window_bounds = array<i64: 6, 1>}, {pipeline_mode = #tpu.pipeline_mode<synchronous>, transform_indices = @transform_2, window_bounds = array<i64: 6, 1>}, {transform_indices = @transform_3, window_bounds = array<i64: 6, 256>}]} {
    %c6_i32 = arith.constant 6 : i32
    %0 = arith.muli %arg0, %c6_i32 : i32
    %1 = arith.index_cast %0 : i32 to index
    %c0 = arith.constant 0 : index
    %2 = vector.load %arg3[%1, %c0] : memref<6x1xf32, #tpu.memory_space<vmem>>, vector<6x1xf32>
    %3 = arith.index_cast %0 : i32 to index
    %c0_0 = arith.constant 0 : index
    %4 = vector.load %arg4[%3, %c0_0] : memref<6x1xf32, #tpu.memory_space<vmem>>, vector<6x1xf32>
    %c0_1 = arith.constant 0 : index
    %c0_2 = arith.constant 0 : index
    %5 = vector.load %arg2[%c0_1, %c0_2] : memref<6x256xf32, #tpu.memory_space<vmem>>, vector<6x256xf32>
    %6 = vector.broadcast %2 : vector<6x1xf32> to vector<6x256xf32>
    %7 = arith.subf %5, %6 : vector<6x256xf32>
    %8 = vector.broadcast %4 : vector<6x1xf32> to vector<6x256xf32>
    %9 = arith.mulf %7, %8 : vector<6x256xf32>
    %c0_3 = arith.constant 0 : index
    %c0_4 = arith.constant 0 : index
    %10 = vector.load %arg5[%c0_3, %c0_4] : memref<6x256xf32, #tpu.memory_space<vmem>>, vector<6x256xf32>
    tpu.vector_store %arg5[%c0_3, %c0_4], %9 {strides = array<i32>} : memref<6x256xf32, #tpu.memory_space<vmem>>, vector<6x256xf32>,
    return
  }
  func.func @transform_0(%arg0: i32, %arg1: i32) -> (i32, i32) {
    %c0_i32 = arith.constant 0 : i32
    return %arg0, %arg1 : i32, i32
  }
  func.func @transform_1(%arg0: i32, %arg1: i32) -> (i32, i32) {
    %c0_i32 = arith.constant 0 : i32
    %c0_i32_0 = arith.constant 0 : i32
    %c0_i32_1 = arith.constant 0 : i32
    return %c0_i32, %c0_i32_0 : i32, i32
  }
  func.func @transform_2(%arg0: i32, %arg1: i32) -> (i32, i32) {
    %c0_i32 = arith.constant 0 : i32
    %c0_i32_0 = arith.constant 0 : i32
    %c0_i32_1 = arith.constant 0 : i32
    return %c0_i32, %c0_i32_0 : i32, i32
  }
  func.func @transform_3(%arg0: i32, %arg1: i32) -> (i32, i32) {
    %c0_i32 = arith.constant 0 : i32
    return %arg0, %arg1 : i32, i32
  }
}

</mosaic_0001>

<llo_original>
// kernel: tpu_custom_call.1
$region0: #{tpu_custom_call.1}
  #allocation0 [shape = 'u32[]', space=smem, size = 0x4, offset = 0x4, fixed_abs, tag = 'smem constant byte address 0x4 - core index']
  #allocation1 [shape = 'u32[144,128]{1,0:T(1,128)}', space=vmem, size = 0x12000, scoped, tag = 'internal scratch']
  %s0 = inlined_call_operand.vmem [shape: f32[6,256], index: 0, kind: input, shape index: {}]
  %s1 = inlined_call_operand.vmem [shape: f32[6,1], index: 1, kind: input, shape index: {}]
  %s2 = inlined_call_operand.vmem [shape: f32[6,1], index: 2, kind: input, shape index: {}]
  %s3 = inlined_call_operand.hbm [shape: f32[6,256], index: 3, kind: output, shape index: {}]
  %s4 = sld [smem:[#allocation0]]
  $region22: #{tpu_custom_call.1} parent=0
    _
  %s6 = ssub.s32 1, %s4
  %s7 = scalar_select 0, %s6, %s4
  $region1: #{tpu_custom_call.1} parent=0
    #allocation2 [shape = 'u8[8192]{0}', space=vmem, size = 0x2000, scoped, tag = 'output window, operand 0, single buffered']
    #allocation3 [shape = 's32[1]{0}', space=sflag, size = 0x4, scoped, tag = 'scoped memory for tpu_custom_call.1']
    %8 = vsyncpa [#allocation3], 0
    // Predicated region
    $region2: #{tpu_custom_call.1} parent=1 // pred_check
      _
    $region3: #{tpu_custom_call.1} parent=1 // pred_check_branch
      %10 = sbr.rel (0) target = $region5
    $region4: #{tpu_custom_call.1} parent=1 // pred_region
      _
    $region5: #{tpu_custom_call.1} parent=1 // pred_fallthru
      _
    // Predicated region
    $region6: #{tpu_custom_call.1} parent=1 // pred_check
      _
    $region7: #{tpu_custom_call.1} parent=1 // pred_check_branch
      %12 = sbr.rel (0) target = $region9
    $region8: #{tpu_custom_call.1} parent=1 // pred_region
      _
    $region9: #{tpu_custom_call.1} parent=1 // pred_fallthru
      _
    // Predicated region
    $region10: #{tpu_custom_call.1} parent=1 // pred_check
      _
    $region11: #{tpu_custom_call.1} parent=1 // pred_check_branch
      %14 = sbr.rel (0) target = $region13
    $region12: #{tpu_custom_call.1} parent=1 // pred_region
      _
    $region13: #{tpu_custom_call.1} parent=1 // pred_fallthru
      _
    %s15 = smul.u32 0, 6
    %s16 = scalar_lea.vmem %s1, %s15
    %v17 = vld [vmem:[%s16] sm:$0x3f]
    %s18 = scalar_lea.vmem %s2, %s15
    %v19 = vld [vmem:[%s18] sm:$0x3f]
    %v20 = vld [vmem:[%s0] sm:$0x3f]
    %v21 = vld [vmem:[%s0 + $0x8] sm:$0x3f]
    %23 = vset.pattern.permute.xlu0 0
    %24 = vperm.xlu0 %23, %v17
    %v25 = vpop.permute.xlu0 %24
    %v27 = vsub.f32 %v20, %v25
    %v28 = vsub.f32 %v21, %v25
    %30 = vset.pattern.permute.xlu0 0
    %31 = vperm.xlu0 %30, %v19
    %v32 = vpop.permute.xlu0 %31
    %v34 = vmul.f32 %v27, %v32
    %v35 = vmul.f32 %v28, %v32
    %36 = vst [vmem:[#allocation2] sm:$0x3f] %v34
    %37 = vst [vmem:[#allocation2 + $0x8] sm:$0x3f] %v35
    // Predicated region
    $region14: #{tpu_custom_call.1} parent=1 // pred_check
      _
    $region15: #{tpu_custom_call.1} parent=1 // pred_check_branch
      %39 = sbr.rel (0) target = $region17
    $region16: #{tpu_custom_call.1} parent=1 // pred_region
      %s41 = ssub.s32 256, 256
      %42 = vsyncadd [#allocation3], %s41
      %s44 = sshll.u32 [#allocation2], 4
      %s45 = int_to_ptr.vmem [resolvable:$true] %s44
      %47 = dma.vmem_to_hbm [thread:$0]  %s45, 256, %s3, [#allocation3]
    $region17: #{tpu_custom_call.1} parent=1 // pred_fallthru
      _
    // Predicated region
    $region18: #{tpu_custom_call.1} parent=1 // pred_check
      _
    $region19: #{tpu_custom_call.1} parent=1 // pred_check_branch
      %49 = sbr.rel (0) target = $region21
    $region20: #{tpu_custom_call.1} parent=1 // pred_region
      %50 = dma.done [#allocation3], 256
    $region21: #{tpu_custom_call.1} parent=1 // pred_fallthru
      _
    %51 = vsyncpa [#allocation3], 1

</llo_original>
